<compile_context>
chip_gen: v7x
topology: tpu7x:2x2x1
jax: 0.10.0
libtpu: 0.0.40
codegen_flags: <defaults>
</compile_context>

<pallas_src>
import functools

import jax
import jax.numpy as jnp
from jax import lax
from jax.experimental import pallas as pl
from jax.experimental.pallas import tpu as pltpu


def nlp_lstm_kernel(tok_ref, slab_ref, out_ref, *, V, H, Bp):
    TBp = tok_ref.shape[0]          # T * Bp, time-major row order
    T = TBp // Bp
    B = out_ref.shape[0]
    G = 4 * H                       # 128 gate lanes

    # ---- static slab slices (free; all offsets 8-sublane aligned) ----
    gate_tbl = slab_ref[0:V, :]                      # (V, 4H)  table + bias fold
    whh      = slab_ref[V:V + H, :]                  # (H, 4H)
    w1p      = slab_ref[V + H:V + 2 * H, :]          # (H, 128) fc1^T in cols 0:H
    misc     = slab_ref[V + 2 * H:V + 2 * H + 8, :]  # (8, 128)
    b1p = misc[0:1, :]   # b1 in cols 0:H, 1.0 at col 127 (fc2-bias trick)
    w2r = misc[1:2, :]   # fc2 weights in cols 0:H, b2 at col 127

    # ---- embedding+fc0+Wih gather: one-hot @ gate_table (single MXU push) ----
    tok = tok_ref[...]                                              # (TBp, 1) int32
    onehot = (lax.broadcasted_iota(jnp.int32, (TBp, V), 1) == tok).astype(jnp.bfloat16)
    gates_x = jnp.dot(onehot, gate_tbl.astype(jnp.bfloat16),
                      preferred_element_type=jnp.float32)           # (TBp, 4H)

    # hoisted lane mask: g-gate lanes get tanh, i/f/o lanes get sigmoid
    lane = lax.broadcasted_iota(jnp.int32, (Bp, G), 1)
    is_g = (lane >= 2 * H) & (lane < 3 * H)

    whh_bf = whh.astype(jnp.bfloat16)

    # ---- single-layer unidirectional LSTM (PyTorch gate order i, f, g, o) ----
    h = jnp.zeros((Bp, H), jnp.float32)
    c = jnp.zeros((Bp, H), jnp.float32)
    for t in range(T):              # static unroll; aligned (8,128) gate slices
        pre = gates_x[t * Bp:(t + 1) * Bp, :] + jnp.dot(
            h.astype(jnp.bfloat16), whh_bf, preferred_element_type=jnp.float32)
        # one EUP push for all four gates: sigmoid(x) = 0.5*tanh(0.5*x)+0.5
        blended = jnp.where(is_g, pre, 0.5 * pre)
        th = jnp.tanh(blended)
        act = jnp.where(is_g, th, 0.5 * th + 0.5)
        i_g = act[:, 0:H]
        f_g = act[:, H:2 * H]
        g_g = act[:, 2 * H:3 * H]
        o_g = act[:, 3 * H:4 * H]
        c = f_g * c + i_g * g_g
        h = o_g * jnp.tanh(c)       # h after last step == outputs[:, -1, :]

    # ---- head: fc1 + ReLU, fc2 (+bias via ones column), sigmoid ----
    y = jnp.maximum(
        jnp.dot(h.astype(jnp.bfloat16), w1p.astype(jnp.bfloat16),
                preferred_element_type=jnp.float32) + b1p, 0.0)      # (Bp, 128)
    z = jnp.sum(y * w2r, axis=1, keepdims=True)                      # (Bp, 1)
    out_ref[...] = (0.5 * jnp.tanh(0.5 * z) + 0.5)[0:B, :]


def nlp_lstm_forward(tokens, params):
    B, T = tokens.shape
    V = params["vocab"]
    H = params["hidden"]
    Bp = max(8, ((B + 7) // 8) * 8)   # pad batch to the 8-sublane boundary

    # tiny (T*Bp, 1) int32 column, time-major; dummy batch rows use token 0
    # (LSTM recurrence is batch-row-wise, so padded rows never touch real rows).
    tok_tm = jnp.zeros((T, Bp), jnp.int32).at[:, :B].set(
        jnp.transpose(tokens).astype(jnp.int32))
    tok_col = tok_tm.reshape(T * Bp, 1)

    vmem = pl.BlockSpec(memory_space=pltpu.MemorySpace.VMEM)
    kernel = functools.partial(nlp_lstm_kernel, V=V, H=H, Bp=Bp)
    return pl.pallas_call(
        kernel,
        out_shape=jax.ShapeDtypeStruct((B, 1), jnp.float32),
        in_specs=[vmem, vmem],
        out_specs=vmem,
    )(tok_col, params["slab"])


def init_params(key, vocab, E, H):
    ks = jax.random.split(key, 11)
    s = 0.1
    embedding = jax.random.normal(ks[0], (vocab, E), jnp.float32) * s
    w0 = jax.random.normal(ks[1], (E, E), jnp.float32) * s        # fc0 weight (out,in)
    b0 = jax.random.normal(ks[2], (E,), jnp.float32) * s
    wih = jax.random.normal(ks[3], (4 * H, E), jnp.float32) * s   # weight_ih_l0
    whh = jax.random.normal(ks[4], (4 * H, H), jnp.float32) * s   # weight_hh_l0
    bih = jax.random.normal(ks[5], (4 * H,), jnp.float32) * s
    bhh = jax.random.normal(ks[6], (4 * H,), jnp.float32) * s
    w1 = jax.random.normal(ks[7], (H, H), jnp.float32) * s        # fc1 (H, H*bi), bi=1
    b1 = jax.random.normal(ks[8], (H,), jnp.float32) * s
    w2 = jax.random.normal(ks[9], (1, H), jnp.float32) * s        # fc2
    b2 = jax.random.normal(ks[10], (1,), jnp.float32) * s

    # ---- exact prologue fold (one-time param prep, not per-call work) ----
    x = jnp.maximum(embedding @ w0.T + b0, 0.0)
    x = jnp.maximum(x @ w0.T + b0, 0.0)
    gate_table = x @ wih.T + (bih + bhh)                # (V, 4H), bias folded in

    G = 4 * H
    rows = vocab + 2 * H + 8                            # = 136, multiple of 8
    slab = jnp.zeros((rows, G), jnp.float32)
    slab = slab.at[0:vocab, :].set(gate_table)
    slab = slab.at[vocab:vocab + H, :].set(whh.T)
    slab = slab.at[vocab + H:vocab + 2 * H, 0:H].set(w1.T)
    slab = slab.at[vocab + 2 * H, 0:H].set(b1)
    slab = slab.at[vocab + 2 * H, G - 1].set(1.0)       # ones column for fc2 bias
    slab = slab.at[vocab + 2 * H + 1, 0:H].set(w2[0])
    slab = slab.at[vocab + 2 * H + 1, G - 1].set(b2[0])

    return dict(slab=slab, vocab=vocab, hidden=H,
                embedding=embedding, w0=w0, b0=b0, wih=wih, whh=whh,
                bih=bih, bhh=bhh, w1=w1, b1=b1, w2=w2, b2=b2)


def reference_forward(tokens, p):
    # pure-JAX f32 reference of the original module math (for correctness check)
    emb = jnp.take(p["embedding"], tokens, axis=0)                  # (B, T, E)
    x = jnp.maximum(emb @ p["w0"].T + p["b0"], 0.0)
    x = jnp.maximum(x @ p["w0"].T + p["b0"], 0.0)
    B = x.shape[0]
    H = p["whh"].shape[1]
    bl = p["bih"] + p["bhh"]

    def step(carry, xt):
        h, c = carry
        g = xt @ p["wih"].T + h @ p["whh"].T + bl
        i = jax.nn.sigmoid(g[:, :H]); f = jax.nn.sigmoid(g[:, H:2 * H])
        gg = jnp.tanh(g[:, 2 * H:3 * H]); o = jax.nn.sigmoid(g[:, 3 * H:])
        c = f * c + i * gg
        h = o * jnp.tanh(c)
        return (h, c), None

    (h, _), _ = lax.scan(step,
                         (jnp.zeros((B, H), jnp.float32), jnp.zeros((B, H), jnp.float32)),
                         jnp.transpose(x, (1, 0, 2)))
    y = jnp.maximum(h @ p["w1"].T + p["b1"], 0.0)
    return jax.nn.sigmoid(y @ p["w2"].T + p["b2"])


if __name__ == "__main__":
    B, T = 2, 8
    VOCAB, E, H = 64, 32, 32

    key = jax.random.PRNGKey(0)
    k_tok, k_par = jax.random.split(key)
    tokens = jax.random.randint(k_tok, (B, T), 0, VOCAB, dtype=jnp.int32)
    params = init_params(k_par, VOCAB, E, H)

    out = jax.block_until_ready(nlp_lstm_forward(tokens, params))
    ref = jax.block_until_ready(reference_forward(tokens, params))

    assert out.shape == (B, 1), out.shape
    # bf16 MXU operands (f32 accumulation / f32 carries) -> slightly looser tol
    assert jnp.allclose(out, ref, atol=2e-2, rtol=2e-2), (out, ref)
    print("KERNEL_OK")
</pallas_src>

<mosaic_0001>
module attributes {stable_mosaic.version = 11 : i64} {
  func.func @nlp_lstm_kernel(%arg0: memref<64x1xi32, #tpu.memory_space<vmem>>, %arg1: memref<136x128xf32, #tpu.memory_space<vmem>>, %arg2: memref<2x1xf32, #tpu.memory_space<vmem>>) attributes {dimension_semantics = [], scalar_prefetch = 0 : i64, scratch_operands = 0 : i64, tpu.core_type = #tpu.core_type<tc>} {
    %c0 = arith.constant 0 : index
    %c0_0 = arith.constant 0 : index
    %0 = vector.load %arg1[%c0, %c0_0] : memref<136x128xf32, #tpu.memory_space<vmem>>, vector<64x128xf32>
    %c64 = arith.constant 64 : index
    %c0_1 = arith.constant 0 : index
    %1 = vector.load %arg1[%c64, %c0_1] : memref<136x128xf32, #tpu.memory_space<vmem>>, vector<32x128xf32>
    %c96 = arith.constant 96 : index
    %c0_2 = arith.constant 0 : index
    %2 = vector.load %arg1[%c96, %c0_2] : memref<136x128xf32, #tpu.memory_space<vmem>>, vector<32x128xf32>
    %c128 = arith.constant 128 : index
    %c0_3 = arith.constant 0 : index
    %3 = vector.load %arg1[%c128, %c0_3] : memref<136x128xf32, #tpu.memory_space<vmem>>, vector<8x128xf32>
    %4 = vector.extract_strided_slice %3 {offsets = [0, 0], sizes = [1, 128], strides = [1, 1]} : vector<8x128xf32> to vector<1x128xf32>
    %5 = vector.extract_strided_slice %3 {offsets = [1, 0], sizes = [1, 128], strides = [1, 1]} : vector<8x128xf32> to vector<1x128xf32>
    %c0_4 = arith.constant 0 : index
    %c0_5 = arith.constant 0 : index
    %6 = vector.load %arg0[%c0_4, %c0_5] : memref<64x1xi32, #tpu.memory_space<vmem>>, vector<64x1xi32>
    %7 = tpu.iota {dimensions = array<i32: 1>} : vector<64x64xi32>
    %8 = vector.broadcast %6 : vector<64x1xi32> to vector<64x64xi32>
    %9 = arith.cmpi eq, %7, %8 : vector<64x64xi32>
    %10 = arith.extui %9 : vector<64x64xi1> to vector<64x64xi32>
    %11 = arith.sitofp %10 : vector<64x64xi32> to vector<64x64xf32>
    %12 = arith.truncf %11 : vector<64x64xf32> to vector<64x64xbf16>
    %13 = arith.truncf %0 : vector<64x128xf32> to vector<64x128xbf16>
    %cst = arith.constant dense<0.000000e+00> : vector<64x128xf32>
    %14 = tpu.matmul %12, %13, %cst {dimension_numbers = #tpu.dot_dimension_numbers<[1], [0], [0], [1], [0, 0, 1, 1], [], []>} : vector<64x64xbf16>, vector<64x128xbf16>, vector<64x128xf32> -> vector<64x128xf32>
    %15 = tpu.iota {dimensions = array<i32: 1>} : vector<8x128xi32>
    %c64_i32 = arith.constant 64 : i32
    %16 = vector.broadcast %c64_i32 : i32 to vector<8x128xi32>
    %17 = arith.cmpi sge, %15, %16 : vector<8x128xi32>
    %c96_i32 = arith.constant 96 : i32
    %18 = vector.broadcast %c96_i32 : i32 to vector<8x128xi32>
    %19 = arith.cmpi slt, %15, %18 : vector<8x128xi32>
    %20 = arith.andi %17, %19 : vector<8x128xi1>
    %21 = arith.truncf %1 : vector<32x128xf32> to vector<32x128xbf16>
    %cst_6 = arith.constant 0.000000e+00 : f32
    %22 = vector.broadcast %cst_6 : f32 to vector<8x32xf32>
    %cst_7 = arith.constant 0.000000e+00 : f32
    %23 = vector.broadcast %cst_7 : f32 to vector<8x32xf32>
    %24 = vector.extract_strided_slice %14 {offsets = [0, 0], sizes = [8, 128], strides = [1, 1]} : vector<64x128xf32> to vector<8x128xf32>
    %25 = arith.truncf %22 : vector<8x32xf32> to vector<8x32xbf16>
    %cst_8 = arith.constant dense<0.000000e+00> : vector<8x128xf32>
    %26 = tpu.matmul %25, %21, %cst_8 {dimension_numbers = #tpu.dot_dimension_numbers<[1], [0], [0], [1], [0, 0, 1, 1], [], []>} : vector<8x32xbf16>, vector<32x128xbf16>, vector<8x128xf32> -> vector<8x128xf32>
    %27 = arith.addf %24, %26 : vector<8x128xf32>
    %cst_9 = arith.constant 5.000000e-01 : f32
    %28 = vector.broadcast %cst_9 : f32 to vector<8x128xf32>
    %29 = arith.mulf %28, %27 : vector<8x128xf32>
    %30 = arith.select %20, %27, %29 : vector<8x128xi1>, vector<8x128xf32>
    %31 = math.tanh %30 : vector<8x128xf32>
    %cst_10 = arith.constant 5.000000e-01 : f32
    %32 = vector.broadcast %cst_10 : f32 to vector<8x128xf32>
    %33 = arith.mulf %32, %31 : vector<8x128xf32>
    %cst_11 = arith.constant 5.000000e-01 : f32
    %34 = vector.broadcast %cst_11 : f32 to vector<8x128xf32>
    %35 = arith.addf %33, %34 : vector<8x128xf32>
    %36 = arith.select %20, %31, %35 : vector<8x128xi1>, vector<8x128xf32>
    %37 = vector.extract_strided_slice %36 {offsets = [0, 0], sizes = [8, 32], strides = [1, 1]} : vector<8x128xf32> to vector<8x32xf32>
    %38 = vector.extract_strided_slice %36 {offsets = [0, 32], sizes = [8, 32], strides = [1, 1]} : vector<8x128xf32> to vector<8x32xf32>
    %39 = vector.extract_strided_slice %36 {offsets = [0, 64], sizes = [8, 32], strides = [1, 1]} : vector<8x128xf32> to vector<8x32xf32>
    %40 = vector.extract_strided_slice %36 {offsets = [0, 96], sizes = [8, 32], strides = [1, 1]} : vector<8x128xf32> to vector<8x32xf32>
    %41 = arith.mulf %38, %23 : vector<8x32xf32>
    %42 = arith.mulf %37, %39 : vector<8x32xf32>
    %43 = arith.addf %41, %42 : vector<8x32xf32>
    %44 = math.tanh %43 : vector<8x32xf32>
    %45 = arith.mulf %40, %44 : vector<8x32xf32>
    %46 = vector.extract_strided_slice %14 {offsets = [8, 0], sizes = [8, 128], strides = [1, 1]} : vector<64x128xf32> to vector<8x128xf32>
    %47 = arith.truncf %45 : vector<8x32xf32> to vector<8x32xbf16>
    %cst_12 = arith.constant dense<0.000000e+00> : vector<8x128xf32>
    %48 = tpu.matmul %47, %21, %cst_12 {dimension_numbers = #tpu.dot_dimension_numbers<[1], [0], [0], [1], [0, 0, 1, 1], [], []>} : vector<8x32xbf16>, vector<32x128xbf16>, vector<8x128xf32> -> vector<8x128xf32>
    %49 = arith.addf %46, %48 : vector<8x128xf32>
    %cst_13 = arith.constant 5.000000e-01 : f32
    %50 = vector.broadcast %cst_13 : f32 to vector<8x128xf32>
    %51 = arith.mulf %50, %49 : vector<8x128xf32>
    %52 = arith.select %20, %49, %51 : vector<8x128xi1>, vector<8x128xf32>
    %53 = math.tanh %52 : vector<8x128xf32>
    %cst_14 = arith.constant 5.000000e-01 : f32
    %54 = vector.broadcast %cst_14 : f32 to vector<8x128xf32>
    %55 = arith.mulf %54, %53 : vector<8x128xf32>
    %cst_15 = arith.constant 5.000000e-01 : f32
    %56 = vector.broadcast %cst_15 : f32 to vector<8x128xf32>
    %57 = arith.addf %55, %56 : vector<8x128xf32>
    %58 = arith.select %20, %53, %57 : vector<8x128xi1>, vector<8x128xf32>
    %59 = vector.extract_strided_slice %58 {offsets = [0, 0], sizes = [8, 32], strides = [1, 1]} : vector<8x128xf32> to vector<8x32xf32>
    %60 = vector.extract_strided_slice %58 {offsets = [0, 32], sizes = [8, 32], strides = [1, 1]} : vector<8x128xf32> to vector<8x32xf32>
    %61 = vector.extract_strided_slice %58 {offsets = [0, 64], sizes = [8, 32], strides = [1, 1]} : vector<8x128xf32> to vector<8x32xf32>
    %62 = vector.extract_strided_slice %58 {offsets = [0, 96], sizes = [8, 32], strides = [1, 1]} : vector<8x128xf32> to vector<8x32xf32>
    %63 = arith.mulf %60, %43 : vector<8x32xf32>
    %64 = arith.mulf %59, %61 : vector<8x32xf32>
    %65 = arith.addf %63, %64 : vector<8x32xf32>
    %66 = math.tanh %65 : vector<8x32xf32>
    %67 = arith.mulf %62, %66 : vector<8x32xf32>
    %68 = vector.extract_strided_slice %14 {offsets = [16, 0], sizes = [8, 128], strides = [1, 1]} : vector<64x128xf32> to vector<8x128xf32>
    %69 = arith.truncf %67 : vector<8x32xf32> to vector<8x32xbf16>
    %cst_16 = arith.constant dense<0.000000e+00> : vector<8x128xf32>
    %70 = tpu.matmul %69, %21, %cst_16 {dimension_numbers = #tpu.dot_dimension_numbers<[1], [0], [0], [1], [0, 0, 1, 1], [], []>} : vector<8x32xbf16>, vector<32x128xbf16>, vector<8x128xf32> -> vector<8x128xf32>
    %71 = arith.addf %68, %70 : vector<8x128xf32>
    %cst_17 = arith.constant 5.000000e-01 : f32
    %72 = vector.broadcast %cst_17 : f32 to vector<8x128xf32>
    %73 = arith.mulf %72, %71 : vector<8x128xf32>
    %74 = arith.select %20, %71, %73 : vector<8x128xi1>, vector<8x128xf32>
    %75 = math.tanh %74 : vector<8x128xf32>
    %cst_18 = arith.constant 5.000000e-01 : f32
    %76 = vector.broadcast %cst_18 : f32 to vector<8x128xf32>
    %77 = arith.mulf %76, %75 : vector<8x128xf32>
    %cst_19 = arith.constant 5.000000e-01 : f32
    %78 = vector.broadcast %cst_19 : f32 to vector<8x128xf32>
    %79 = arith.addf %77, %78 : vector<8x128xf32>
    %80 = arith.select %20, %75, %79 : vector<8x128xi1>, vector<8x128xf32>
    %81 = vector.extract_strided_slice %80 {offsets = [0, 0], sizes = [8, 32], strides = [1, 1]} : vector<8x128xf32> to vector<8x32xf32>
    %82 = vector.extract_strided_slice %80 {offsets = [0, 32], sizes = [8, 32], strides = [1, 1]} : vector<8x128xf32> to vector<8x32xf32>
    %83 = vector.extract_strided_slice %80 {offsets = [0, 64], sizes = [8, 32], strides = [1, 1]} : vector<8x128xf32> to vector<8x32xf32>
    %84 = vector.extract_strided_slice %80 {offsets = [0, 96], sizes = [8, 32], strides = [1, 1]} : vector<8x128xf32> to vector<8x32xf32>
    %85 = arith.mulf %82, %65 : vector<8x32xf32>
    %86 = arith.mulf %81, %83 : vector<8x32xf32>
    %87 = arith.addf %85, %86 : vector<8x32xf32>
    %88 = math.tanh %87 : vector<8x32xf32>
    %89 = arith.mulf %84, %88 : vector<8x32xf32>
    %90 = vector.extract_strided_slice %14 {offsets = [24, 0], sizes = [8, 128], strides = [1, 1]} : vector<64x128xf32> to vector<8x128xf32>
    %91 = arith.truncf %89 : vector<8x32xf32> to vector<8x32xbf16>
    %cst_20 = arith.constant dense<0.000000e+00> : vector<8x128xf32>
    %92 = tpu.matmul %91, %21, %cst_20 {dimension_numbers = #tpu.dot_dimension_numbers<[1], [0], [0], [1], [0, 0, 1, 1], [], []>} : vector<8x32xbf16>, vector<32x128xbf16>, vector<8x128xf32> -> vector<8x128xf32>
    %93 = arith.addf %90, %92 : vector<8x128xf32>
    %cst_21 = arith.constant 5.000000e-01 : f32
    %94 = vector.broadcast %cst_21 : f32 to vector<8x128xf32>
    %95 = arith.mulf %94, %93 : vector<8x128xf32>
    %96 = arith.select %20, %93, %95 : vector<8x128xi1>, vector<8x128xf32>
    %97 = math.tanh %96 : vector<8x128xf32>
    %cst_22 = arith.constant 5.000000e-01 : f32
    %98 = vector.broadcast %cst_22 : f32 to vector<8x128xf32>
    %99 = arith.mulf %98, %97 : vector<8x128xf32>
    %cst_23 = arith.constant 5.000000e-01 : f32
    %100 = vector.broadcast %cst_23 : f32 to vector<8x128xf32>
    %101 = arith.addf %99, %100 : vector<8x128xf32>
    %102 = arith.select %20, %97, %101 : vector<8x128xi1>, vector<8x128xf32>
    %103 = vector.extract_strided_slice %102 {offsets = [0, 0], sizes = [8, 32], strides = [1, 1]} : vector<8x128xf32> to vector<8x32xf32>
    %104 = vector.extract_strided_slice %102 {offsets = [0, 32], sizes = [8, 32], strides = [1, 1]} : vector<8x128xf32> to vector<8x32xf32>
    %105 = vector.extract_strided_slice %102 {offsets = [0, 64], sizes = [8, 32], strides = [1, 1]} : vector<8x128xf32> to vector<8x32xf32>
    %106 = vector.extract_strided_slice %102 {offsets = [0, 96], sizes = [8, 32], strides = [1, 1]} : vector<8x128xf32> to vector<8x32xf32>
    %107 = arith.mulf %104, %87 : vector<8x32xf32>
    %108 = arith.mulf %103, %105 : vector<8x32xf32>
    %109 = arith.addf %107, %108 : vector<8x32xf32>
    %110 = math.tanh %109 : vector<8x32xf32>
    %111 = arith.mulf %106, %110 : vector<8x32xf32>
    %112 = vector.extract_strided_slice %14 {offsets = [32, 0], sizes = [8, 128], strides = [1, 1]} : vector<64x128xf32> to vector<8x128xf32>
    %113 = arith.truncf %111 : vector<8x32xf32> to vector<8x32xbf16>
    %cst_24 = arith.constant dense<0.000000e+00> : vector<8x128xf32>
    %114 = tpu.matmul %113, %21, %cst_24 {dimension_numbers = #tpu.dot_dimension_numbers<[1], [0], [0], [1], [0, 0, 1, 1], [], []>} : vector<8x32xbf16>, vector<32x128xbf16>, vector<8x128xf32> -> vector<8x128xf32>
    %115 = arith.addf %112, %114 : vector<8x128xf32>
    %cst_25 = arith.constant 5.000000e-01 : f32
    %116 = vector.broadcast %cst_25 : f32 to vector<8x128xf32>
    %117 = arith.mulf %116, %115 : vector<8x128xf32>
    %118 = arith.select %20, %115, %117 : vector<8x128xi1>, vector<8x128xf32>
    %119 = math.tanh %118 : vector<8x128xf32>
    %cst_26 = arith.constant 5.000000e-01 : f32
    %120 = vector.broadcast %cst_26 : f32 to vector<8x128xf32>
    %121 = arith.mulf %120, %119 : vector<8x128xf32>
    %cst_27 = arith.constant 5.000000e-01 : f32
    %122 = vector.broadcast %cst_27 : f32 to vector<8x128xf32>
    %123 = arith.addf %121, %122 : vector<8x128xf32>
    %124 = arith.select %20, %119, %123 : vector<8x128xi1>, vector<8x128xf32>
    %125 = vector.extract_strided_slice %124 {offsets = [0, 0], sizes = [8, 32], strides = [1, 1]} : vector<8x128xf32> to vector<8x32xf32>
    %126 = vector.extract_strided_slice %124 {offsets = [0, 32], sizes = [8, 32], strides = [1, 1]} : vector<8x128xf32> to vector<8x32xf32>
    %127 = vector.extract_strided_slice %124 {offsets = [0, 64], sizes = [8, 32], strides = [1, 1]} : vector<8x128xf32> to vector<8x32xf32>
    %128 = vector.extract_strided_slice %124 {offsets = [0, 96], sizes = [8, 32], strides = [1, 1]} : vector<8x128xf32> to vector<8x32xf32>
    %129 = arith.mulf %126, %109 : vector<8x32xf32>
    %130 = arith.mulf %125, %127 : vector<8x32xf32>
    %131 = arith.addf %129, %130 : vector<8x32xf32>
    %132 = math.tanh %131 : vector<8x32xf32>
    %133 = arith.mulf %128, %132 : vector<8x32xf32>
    %134 = vector.extract_strided_slice %14 {offsets = [40, 0], sizes = [8, 128], strides = [1, 1]} : vector<64x128xf32> to vector<8x128xf32>
    %135 = arith.truncf %133 : vector<8x32xf32> to vector<8x32xbf16>
    %cst_28 = arith.constant dense<0.000000e+00> : vector<8x128xf32>
    %136 = tpu.matmul %135, %21, %cst_28 {dimension_numbers = #tpu.dot_dimension_numbers<[1], [0], [0], [1], [0, 0, 1, 1], [], []>} : vector<8x32xbf16>, vector<32x128xbf16>, vector<8x128xf32> -> vector<8x128xf32>
    %137 = arith.addf %134, %136 : vector<8x128xf32>
    %cst_29 = arith.constant 5.000000e-01 : f32
    %138 = vector.broadcast %cst_29 : f32 to vector<8x128xf32>
    %139 = arith.mulf %138, %137 : vector<8x128xf32>
    %140 = arith.select %20, %137, %139 : vector<8x128xi1>, vector<8x128xf32>
    %141 = math.tanh %140 : vector<8x128xf32>
    %cst_30 = arith.constant 5.000000e-01 : f32
    %142 = vector.broadcast %cst_30 : f32 to vector<8x128xf32>
    %143 = arith.mulf %142, %141 : vector<8x128xf32>
    %cst_31 = arith.constant 5.000000e-01 : f32
    %144 = vector.broadcast %cst_31 : f32 to vector<8x128xf32>
    %145 = arith.addf %143, %144 : vector<8x128xf32>
    %146 = arith.select %20, %141, %145 : vector<8x128xi1>, vector<8x128xf32>
    %147 = vector.extract_strided_slice %146 {offsets = [0, 0], sizes = [8, 32], strides = [1, 1]} : vector<8x128xf32> to vector<8x32xf32>
    %148 = vector.extract_strided_slice %146 {offsets = [0, 32], sizes = [8, 32], strides = [1, 1]} : vector<8x128xf32> to vector<8x32xf32>
    %149 = vector.extract_strided_slice %146 {offsets = [0, 64], sizes = [8, 32], strides = [1, 1]} : vector<8x128xf32> to vector<8x32xf32>
    %150 = vector.extract_strided_slice %146 {offsets = [0, 96], sizes = [8, 32], strides = [1, 1]} : vector<8x128xf32> to vector<8x32xf32>
    %151 = arith.mulf %148, %131 : vector<8x32xf32>
    %152 = arith.mulf %147, %149 : vector<8x32xf32>
    %153 = arith.addf %151, %152 : vector<8x32xf32>
    %154 = math.tanh %153 : vector<8x32xf32>
    %155 = arith.mulf %150, %154 : vector<8x32xf32>
    %156 = vector.extract_strided_slice %14 {offsets = [48, 0], sizes = [8, 128], strides = [1, 1]} : vector<64x128xf32> to vector<8x128xf32>
    %157 = arith.truncf %155 : vector<8x32xf32> to vector<8x32xbf16>
    %cst_32 = arith.constant dense<0.000000e+00> : vector<8x128xf32>
    %158 = tpu.matmul %157, %21, %cst_32 {dimension_numbers = #tpu.dot_dimension_numbers<[1], [0], [0], [1], [0, 0, 1, 1], [], []>} : vector<8x32xbf16>, vector<32x128xbf16>, vector<8x128xf32> -> vector<8x128xf32>
    %159 = arith.addf %156, %158 : vector<8x128xf32>
    %cst_33 = arith.constant 5.000000e-01 : f32
    %160 = vector.broadcast %cst_33 : f32 to vector<8x128xf32>
    %161 = arith.mulf %160, %159 : vector<8x128xf32>
    %162 = arith.select %20, %159, %161 : vector<8x128xi1>, vector<8x128xf32>
    %163 = math.tanh %162 : vector<8x128xf32>
    %cst_34 = arith.constant 5.000000e-01 : f32
    %164 = vector.broadcast %cst_34 : f32 to vector<8x128xf32>
    %165 = arith.mulf %164, %163 : vector<8x128xf32>
    %cst_35 = arith.constant 5.000000e-01 : f32
    %166 = vector.broadcast %cst_35 : f32 to vector<8x128xf32>
    %167 = arith.addf %165, %166 : vector<8x128xf32>
    %168 = arith.select %20, %163, %167 : vector<8x128xi1>, vector<8x128xf32>
    %169 = vector.extract_strided_slice %168 {offsets = [0, 0], sizes = [8, 32], strides = [1, 1]} : vector<8x128xf32> to vector<8x32xf32>
    %170 = vector.extract_strided_slice %168 {offsets = [0, 32], sizes = [8, 32], strides = [1, 1]} : vector<8x128xf32> to vector<8x32xf32>
    %171 = vector.extract_strided_slice %168 {offsets = [0, 64], sizes = [8, 32], strides = [1, 1]} : vector<8x128xf32> to vector<8x32xf32>
    %172 = vector.extract_strided_slice %168 {offsets = [0, 96], sizes = [8, 32], strides = [1, 1]} : vector<8x128xf32> to vector<8x32xf32>
    %173 = arith.mulf %170, %153 : vector<8x32xf32>
    %174 = arith.mulf %169, %171 : vector<8x32xf32>
    %175 = arith.addf %173, %174 : vector<8x32xf32>
    %176 = math.tanh %175 : vector<8x32xf32>
    %177 = arith.mulf %172, %176 : vector<8x32xf32>
    %178 = vector.extract_strided_slice %14 {offsets = [56, 0], sizes = [8, 128], strides = [1, 1]} : vector<64x128xf32> to vector<8x128xf32>
    %179 = arith.truncf %177 : vector<8x32xf32> to vector<8x32xbf16>
    %cst_36 = arith.constant dense<0.000000e+00> : vector<8x128xf32>
    %180 = tpu.matmul %179, %21, %cst_36 {dimension_numbers = #tpu.dot_dimension_numbers<[1], [0], [0], [1], [0, 0, 1, 1], [], []>} : vector<8x32xbf16>, vector<32x128xbf16>, vector<8x128xf32> -> vector<8x128xf32>
    %181 = arith.addf %178, %180 : vector<8x128xf32>
    %cst_37 = arith.constant 5.000000e-01 : f32
    %182 = vector.broadcast %cst_37 : f32 to vector<8x128xf32>
    %183 = arith.mulf %182, %181 : vector<8x128xf32>
    %184 = arith.select %20, %181, %183 : vector<8x128xi1>, vector<8x128xf32>
    %185 = math.tanh %184 : vector<8x128xf32>
    %cst_38 = arith.constant 5.000000e-01 : f32
    %186 = vector.broadcast %cst_38 : f32 to vector<8x128xf32>
    %187 = arith.mulf %186, %185 : vector<8x128xf32>
    %cst_39 = arith.constant 5.000000e-01 : f32
    %188 = vector.broadcast %cst_39 : f32 to vector<8x128xf32>
    %189 = arith.addf %187, %188 : vector<8x128xf32>
    %190 = arith.select %20, %185, %189 : vector<8x128xi1>, vector<8x128xf32>
    %191 = vector.extract_strided_slice %190 {offsets = [0, 0], sizes = [8, 32], strides = [1, 1]} : vector<8x128xf32> to vector<8x32xf32>
    %192 = vector.extract_strided_slice %190 {offsets = [0, 32], sizes = [8, 32], strides = [1, 1]} : vector<8x128xf32> to vector<8x32xf32>
    %193 = vector.extract_strided_slice %190 {offsets = [0, 64], sizes = [8, 32], strides = [1, 1]} : vector<8x128xf32> to vector<8x32xf32>
    %194 = vector.extract_strided_slice %190 {offsets = [0, 96], sizes = [8, 32], strides = [1, 1]} : vector<8x128xf32> to vector<8x32xf32>
    %195 = arith.mulf %192, %175 : vector<8x32xf32>
    %196 = arith.mulf %191, %193 : vector<8x32xf32>
    %197 = arith.addf %195, %196 : vector<8x32xf32>
    %198 = math.tanh %197 : vector<8x32xf32>
    %199 = arith.mulf %194, %198 : vector<8x32xf32>
    %200 = arith.truncf %199 : vector<8x32xf32> to vector<8x32xbf16>
    %201 = arith.truncf %2 : vector<32x128xf32> to vector<32x128xbf16>
    %cst_40 = arith.constant dense<0.000000e+00> : vector<8x128xf32>
    %202 = tpu.matmul %200, %201, %cst_40 {dimension_numbers = #tpu.dot_dimension_numbers<[1], [0], [0], [1], [0, 0, 1, 1], [], []>} : vector<8x32xbf16>, vector<32x128xbf16>, vector<8x128xf32> -> vector<8x128xf32>
    %203 = vector.broadcast %4 : vector<1x128xf32> to vector<8x128xf32>
    %204 = arith.addf %202, %203 : vector<8x128xf32>
    %cst_41 = arith.constant 0.000000e+00 : f32
    %205 = vector.broadcast %cst_41 : f32 to vector<8x128xf32>
    %206 = arith.maximumf %204, %205 : vector<8x128xf32>
    %207 = vector.broadcast %5 : vector<1x128xf32> to vector<8x128xf32>
    %208 = arith.mulf %206, %207 : vector<8x128xf32>
    %cst_42 = arith.constant dense<0.000000e+00> : vector<8xf32>
    %209 = vector.multi_reduction <add>, %208, %cst_42 [1] : vector<8x128xf32> to vector<8xf32>
    %210 = vector.shape_cast %209 : vector<8xf32> to vector<8x1xf32>
    %cst_43 = arith.constant 5.000000e-01 : f32
    %211 = vector.broadcast %cst_43 : f32 to vector<8x1xf32>
    %212 = arith.mulf %211, %210 : vector<8x1xf32>
    %213 = math.tanh %212 : vector<8x1xf32>
    %cst_44 = arith.constant 5.000000e-01 : f32
    %214 = vector.broadcast %cst_44 : f32 to vector<8x1xf32>
    %215 = arith.mulf %214, %213 : vector<8x1xf32>
    %cst_45 = arith.constant 5.000000e-01 : f32
    %216 = vector.broadcast %cst_45 : f32 to vector<8x1xf32>
    %217 = arith.addf %215, %216 : vector<8x1xf32>
    %218 = vector.extract_strided_slice %217 {offsets = [0, 0], sizes = [2, 1], strides = [1, 1]} : vector<8x1xf32> to vector<2x1xf32>
    %c0_46 = arith.constant 0 : index
    %c0_47 = arith.constant 0 : index
    %219 = vector.load %arg2[%c0_46, %c0_47] : memref<2x1xf32, #tpu.memory_space<vmem>>, vector<2x1xf32>
    tpu.vector_store %arg2[%c0_46, %c0_47], %218 {strides = array<i32>} : memref<2x1xf32, #tpu.memory_space<vmem>>, vector<2x1xf32>,
    return
  }
}

</mosaic_0001>

<llo_original>
// kernel: tpu_custom_call.1
$region0: #{tpu_custom_call.1}
  #allocation0 [shape = 'u32[]', space=smem, size = 0x4, offset = 0x4, fixed_abs, tag = 'smem constant byte address 0x4 - core index']
  #allocation1 [shape = 'u32[144,128]{1,0:T(1,128)}', space=vmem, size = 0x12000, scoped, tag = 'internal scratch']
  %s0 = inlined_call_operand.vmem [shape: s32[64,1], index: 0, kind: input, shape index: {}]
  %s1 = inlined_call_operand.hbm [shape: f32[136,128], index: 1, kind: input, shape index: {}]
  %s2 = inlined_call_operand.vmem [shape: f32[2,1], index: 2, kind: output, shape index: {}]
  %s3 = sld [smem:[#allocation0]]
  $region22: #{tpu_custom_call.1} parent=0
    _
  %s5 = ssub.s32 1, %s3
  %s6 = scalar_select 0, %s5, %s3
  $region1: #{tpu_custom_call.1} parent=0
    #allocation2 [shape = 'u8[69632]{0}', space=vmem, size = 0x11000, scoped, tag = 'input window, operand 1, single buffered']
    #allocation3 [shape = 's32[1]{0}', space=sflag, size = 0x4, scoped, tag = 'scoped memory for tpu_custom_call.1']
    %7 = vsyncpa [#allocation3], 0
    // Predicated region
    $region2: #{tpu_custom_call.1} parent=1 // pred_check
      _
    $region3: #{tpu_custom_call.1} parent=1 // pred_check_branch
      %9 = sbr.rel (0) target = $region5
    $region4: #{tpu_custom_call.1} parent=1 // pred_region
      _
    $region5: #{tpu_custom_call.1} parent=1 // pred_fallthru
      _
    // Predicated region
    $region6: #{tpu_custom_call.1} parent=1 // pred_check
      _
    $region7: #{tpu_custom_call.1} parent=1 // pred_check_branch
      %11 = sbr.rel (0) target = $region9
    $region8: #{tpu_custom_call.1} parent=1 // pred_region
      %s13 = ssub.s32 2176, 2176
      %14 = vsyncadd [#allocation3], %s13
      %s15 = sshll.u32 [#allocation2], 4
      %s16 = int_to_ptr.vmem [resolvable:$true] %s15
      %21 = dma.hbm_to_vmem [thread:$0]  %s1, 2176, %s16, [#allocation3], 128, 128, 8
    $region9: #{tpu_custom_call.1} parent=1 // pred_fallthru
      _
    // Predicated region
    $region10: #{tpu_custom_call.1} parent=1 // pred_check
      _
    $region11: #{tpu_custom_call.1} parent=1 // pred_check_branch
      %23 = sbr.rel (0) target = $region13
    $region12: #{tpu_custom_call.1} parent=1 // pred_region
      %24 = dma.done [#allocation3], 2176
    $region13: #{tpu_custom_call.1} parent=1 // pred_fallthru
      _
    %v26 = vld [vmem:[#allocation2] sm:$0xff]
    %v27 = vld [vmem:[#allocation2 + $0x8] sm:$0xff]
    %v28 = vld [vmem:[#allocation2 + $0x10] sm:$0xff]
    %v29 = vld [vmem:[#allocation2 + $0x18] sm:$0xff]
    %v30 = vld [vmem:[#allocation2 + $0x20] sm:$0xff]
    %v31 = vld [vmem:[#allocation2 + $0x28] sm:$0xff]
    %v32 = vld [vmem:[#allocation2 + $0x30] sm:$0xff]
    %v33 = vld [vmem:[#allocation2 + $0x38] sm:$0xff]
    %v34 = vld [vmem:[#allocation2 + $0x40] sm:$0xff]
    %v35 = vld [vmem:[#allocation2 + $0x48] sm:$0xff]
    %v36 = vld [vmem:[#allocation2 + $0x50] sm:$0xff]
    %v37 = vld [vmem:[#allocation2 + $0x58] sm:$0xff]
    %v38 = vld [vmem:[#allocation2 + $0x60] sm:$0xff]
    %v39 = vld [vmem:[#allocation2 + $0x68] sm:$0xff]
    %v40 = vld [vmem:[#allocation2 + $0x70] sm:$0xff]
    %v41 = vld [vmem:[#allocation2 + $0x78] sm:$0xff]
    %v42 = vld [vmem:[#allocation2 + $0x80] sm:$0xff]
    %v43 = vld [vmem:[%s0] sm:$0xff]
    %v44 = vld [vmem:[%s0 + $0x8] sm:$0xff]
    %v45 = vld [vmem:[%s0 + $0x10] sm:$0xff]
    %v46 = vld [vmem:[%s0 + $0x18] sm:$0xff]
    %v47 = vld [vmem:[%s0 + $0x20] sm:$0xff]
    %v48 = vld [vmem:[%s0 + $0x28] sm:$0xff]
    %v49 = vld [vmem:[%s0 + $0x30] sm:$0xff]
    %v50 = vld [vmem:[%s0 + $0x38] sm:$0xff]
    %v51 = vlaneseq
    %v52 = vand.u32 %v51, 127
    %53 = vset.pattern.permute.xlu0 0
    %54 = vperm.xlu0 %53, %v43
    %v55 = vpop.permute.xlu0 %54
    %56 = vset.pattern.permute.xlu0 0
    %57 = vperm.xlu0 %56, %v44
    %v58 = vpop.permute.xlu0 %57
    %59 = vset.pattern.permute.xlu0 0
    %60 = vperm.xlu0 %59, %v45
    %v61 = vpop.permute.xlu0 %60
    %62 = vset.pattern.permute.xlu0 0
    %63 = vperm.xlu0 %62, %v46
    %v64 = vpop.permute.xlu0 %63
    %65 = vset.pattern.permute.xlu0 0
    %66 = vperm.xlu0 %65, %v47
    %v67 = vpop.permute.xlu0 %66
    %68 = vset.pattern.permute.xlu0 0
    %69 = vperm.xlu0 %68, %v48
    %v70 = vpop.permute.xlu0 %69
    %71 = vset.pattern.permute.xlu0 0
    %72 = vperm.xlu0 %71, %v49
    %v73 = vpop.permute.xlu0 %72
    %74 = vset.pattern.permute.xlu0 0
    %75 = vperm.xlu0 %74, %v50
    %v76 = vpop.permute.xlu0 %75
    %vm77 = vcmp.eq.s32.totalorder %v52, %v55
    %vm78 = vcmp.eq.s32.totalorder %v52, %v58
    %vm79 = vcmp.eq.s32.totalorder %v52, %v61
    %vm80 = vcmp.eq.s32.totalorder %v52, %v64
    %vm81 = vcmp.eq.s32.totalorder %v52, %v67
    %vm82 = vcmp.eq.s32.totalorder %v52, %v70
    %vm83 = vcmp.eq.s32.totalorder %v52, %v73
    %vm84 = vcmp.eq.s32.totalorder %v52, %v76
    %v85 = vsel %vm77, 1, 0
    %v86 = vsel %vm78, 1, 0
    %v87 = vsel %vm79, 1, 0
    %v88 = vsel %vm80, 1, 0
    %v89 = vsel %vm81, 1, 0
    %v90 = vsel %vm82, 1, 0
    %v91 = vsel %vm83, 1, 0
    %v92 = vsel %vm84, 1, 0
    %v93 = vcvt.s32.f32 %v85
    %v94 = vcvt.s32.f32 %v86
    %v95 = vcvt.s32.f32 %v87
    %v96 = vcvt.s32.f32 %v88
    %v97 = vcvt.s32.f32 %v89
    %v98 = vcvt.s32.f32 %v90
    %v99 = vcvt.s32.f32 %v91
    %v100 = vcvt.s32.f32 %v92
    %v101 = vpack.c.bf16 %v94, %v93
    %v102 = vpack.c.bf16 %v96, %v95
    %v103 = vpack.c.bf16 %v98, %v97
    %v104 = vpack.c.bf16 %v100, %v99
    %v105 = vpack.c.bf16 %v27, %v26
    %v106 = vpack.c.bf16 %v29, %v28
    %v107 = vpack.c.bf16 %v31, %v30
    %v108 = vpack.c.bf16 %v33, %v32
    %vm109 = vcmask 523264
    %v111 = vsel %vm109, %v101, 0
    %v114 = vsel %vm109, %v102, 0
    %v117 = vsel %vm109, %v103, 0
    %v120 = vsel %vm109, %v104, 0
    %122 = vmatprep.subr.bf16.mxu0 0
    %123 = vmatpush1.bf16.msra.mxu0 %v105
    %124 = vmatprep.subr.bf16.mxu0 0
    %125 = vmatpush1.bf16.msra.mxu0 %v106
    %126 = vmatprep.subr.bf16.mxu0 0
    %127 = vmatpush1.bf16.msra.mxu0 %v107
    %128 = vmatprep.subr.bf16.mxu0 0
    %129 = vmatpush1.bf16.msra.mxu0 %v108
    %130 = vmatprep.subr.bf16.mxu0 0
    %131 = vmatpush1.bf16.msra.mxu0 0
    %132 = vmatprep.subr.bf16.mxu0 0
    %133 = vmatpush1.bf16.msra.mxu0 0
    %134 = vmatprep.subr.bf16.mxu0 0
    %135 = vmatpush1.bf16.msra.mxu0 0
    %136 = vmatprep.subr.bf16.mxu0 0
    %137 = vmatpush1.bf16.msra.mxu0 0
    %138 = vmatprep.subr.bf16.mxu0 0
    %139 = vmatpush1.bf16.msra.mxu0 0
    %140 = vmatprep.subr.bf16.mxu0 0
    %141 = vmatpush1.bf16.msra.mxu0 0
    %142 = vmatprep.subr.bf16.mxu0 0
    %143 = vmatpush1.bf16.msra.mxu0 0
    %144 = vmatprep.subr.bf16.mxu0 0
    %145 = vmatpush1.bf16.msra.mxu0 0
    %146 = vmatprep.subr.bf16.mxu0 0
    %147 = vmatpush1.bf16.msra.mxu0 0
    %148 = vmatprep.subr.bf16.mxu0 0
    %149 = vmatpush1.bf16.msra.mxu0 0
    %150 = vmatprep.subr.bf16.mxu0 0
    %151 = vmatpush1.bf16.msra.mxu0 0
    %152 = vmatprep.subr.bf16.mxu0 0
    %153 = vmatpush1.bf16.msra.mxu0 0
    %154 = vmatprep.mubr.bf16.mxu0 0
    %155 = vmatmul.mubr.bf16.gmra.mrb[0].mxu0 %v111
    %v156 = vpop.f32.mrb[0].mxu0
    %v157 = vadd.f32 0.0, %v156
    %v158 = vpop.f32.mrb[0].mxu0
    %v159 = vpop.f32.mrb[0].mxu0
    %v160 = vadd.f32 0.0, %v159
    %v161 = vpop.f32.mrb[0].mxu0
    %162 = vmatprep.mubr.bf16.mxu0 0
    %163 = vmatmul.mubr.bf16.gmra.mrb[0].mxu0 %v114
    %v164 = vpop.f32.mrb[0].mxu0
    %v165 = vadd.f32 0.0, %v164
    %v166 = vpop.f32.mrb[0].mxu0
    %v167 = vpop.f32.mrb[0].mxu0
    %v168 = vadd.f32 0.0, %v167
    %v169 = vpop.f32.mrb[0].mxu0
    %170 = vmatprep.mubr.bf16.mxu0 0
    %171 = vmatmul.mubr.bf16.gmra.mrb[0].mxu0 %v117
    %v172 = vpop.f32.mrb[0].mxu0
    %v173 = vadd.f32 0.0, %v172
    %v174 = vpop.f32.mrb[0].mxu0
    %v175 = vpop.f32.mrb[0].mxu0
    %v176 = vadd.f32 0.0, %v175
    %v177 = vpop.f32.mrb[0].mxu0
    %178 = vmatprep.mubr.bf16.mxu0 0
    %179 = vmatmul.mubr.bf16.gmra.mrb[0].mxu0 %v120
    %v180 = vpop.f32.mrb[0].mxu0
    %v181 = vadd.f32 0.0, %v180
    %v182 = vpop.f32.mrb[0].mxu0
    %v183 = vpop.f32.mrb[0].mxu0
    %v184 = vadd.f32 0.0, %v183
    %v185 = vpop.f32.mrb[0].mxu0
    %186 = vdwg.mxu0
    %vm187 = vcmp.ge.s32.totalorder %v52, 64
    %vm188 = vcmp.lt.s32.totalorder %v52, 96
    %vm189 = vmand %vm187, %vm188
    %v190 = vpack.c.bf16 %v35, %v34
    %v191 = vpack.c.bf16 %v37, %v36
    %vm192 = vcmask 261120
    %v194 = vsel %vm192, 0, 0
    %196 = vmatprep.subr.bf16.mxu0 0
    %197 = vmatpush1.bf16.msra.mxu0 %v190
    %198 = vmatprep.subr.bf16.mxu0 0
    %199 = vmatpush1.bf16.msra.mxu0 %v191
    %200 = vmatprep.subr.bf16.mxu0 0
    %201 = vmatpush1.bf16.msra.mxu0 0
    %202 = vmatprep.subr.bf16.mxu0 0
    %203 = vmatpush1.bf16.msra.mxu0 0
    %204 = vmatprep.subr.bf16.mxu0 0
    %205 = vmatpush1.bf16.msra.mxu0 0
    %206 = vmatprep.subr.bf16.mxu0 0
    %207 = vmatpush1.bf16.msra.mxu0 0
    %208 = vmatprep.subr.bf16.mxu0 0
    %209 = vmatpush1.bf16.msra.mxu0 0
    %210 = vmatprep.subr.bf16.mxu0 0
    %211 = vmatpush1.bf16.msra.mxu0 0
    %212 = vmatprep.subr.bf16.mxu0 0
    %213 = vmatpush1.bf16.msra.mxu0 0
    %214 = vmatprep.subr.bf16.mxu0 0
    %215 = vmatpush1.bf16.msra.mxu0 0
    %216 = vmatprep.subr.bf16.mxu0 0
    %217 = vmatpush1.bf16.msra.mxu0 0
    %218 = vmatprep.subr.bf16.mxu0 0
    %219 = vmatpush1.bf16.msra.mxu0 0
    %220 = vmatprep.subr.bf16.mxu0 0
    %221 = vmatpush1.bf16.msra.mxu0 0
    %222 = vmatprep.subr.bf16.mxu0 0
    %223 = vmatpush1.bf16.msra.mxu0 0
    %224 = vmatprep.subr.bf16.mxu0 0
    %225 = vmatpush1.bf16.msra.mxu0 0
    %226 = vmatprep.subr.bf16.mxu0 0
    %227 = vmatpush1.bf16.msra.mxu0 0
    %228 = vmatprep.mubr.bf16.mxu0 0
    %229 = vmatmul.mubr.bf16.gmra.mrb[0].mxu0 %v194
    %v230 = vpop.f32.mrb[0].mxu0
    %v231 = vadd.f32 0.0, %v230
    %v232 = vpop.f32.mrb[0].mxu0
    %v233 = vpop.f32.mrb[0].mxu0
    %v234 = vpop.f32.mrb[0].mxu0
    %235 = vdwg.mxu0
    %v236 = vadd.f32 %v157, %v231
    %v237 = vmul.f32 %v236, 0.5
    %v238 = vsel %vm189, %v236, %v237
    %v239 = vtanh.pop %v238
    %v240 = vmul.f32 %v239, 0.5
    %v241 = vadd.f32 %v240, 0.5
    %v242 = vsel %vm189, %v239, %v241
    %v243 = vmul.f32 %v242, 0.0
    %245 = vrot.lane.b32.xlu0 %v242, 64
    %v246 = vpop.permute.xlu0 %245
    %v248 = vmul.f32 %v242, %v246
    %250 = vrot.lane.b32.xlu0 %v248, 32
    %v251 = vpop.permute.xlu0 %250
    %v253 = vadd.f32 %v243, %v251
    %v254 = vtanh.pop %v253
    %256 = vrot.lane.b32.xlu0 %v254, 64
    %v257 = vpop.permute.xlu0 %256
    %v259 = vmul.f32 %v242, %v257
    %v260 = vpack.c.bf16 %v259, %v259
    %262 = vrot.lane.b32.xlu0 %v260, 32
    %v263 = vpop.permute.xlu0 %262
    %v265 = vsel %vm192, %v263, 0
    %267 = vmatprep.subr.bf16.mxu0 0
    %268 = vmatpush1.bf16.msra.mxu0 %v190
    %269 = vmatprep.subr.bf16.mxu0 0
    %270 = vmatpush1.bf16.msra.mxu0 %v191
    %271 = vmatprep.subr.bf16.mxu0 0
    %272 = vmatpush1.bf16.msra.mxu0 0
    %273 = vmatprep.subr.bf16.mxu0 0
    %274 = vmatpush1.bf16.msra.mxu0 0
    %275 = vmatprep.subr.bf16.mxu0 0
    %276 = vmatpush1.bf16.msra.mxu0 0
    %277 = vmatprep.subr.bf16.mxu0 0
    %278 = vmatpush1.bf16.msra.mxu0 0
    %279 = vmatprep.subr.bf16.mxu0 0
    %280 = vmatpush1.bf16.msra.mxu0 0
    %281 = vmatprep.subr.bf16.mxu0 0
    %282 = vmatpush1.bf16.msra.mxu0 0
    %283 = vmatprep.subr.bf16.mxu0 0
    %284 = vmatpush1.bf16.msra.mxu0 0
    %285 = vmatprep.subr.bf16.mxu0 0
    %286 = vmatpush1.bf16.msra.mxu0 0
    %287 = vmatprep.subr.bf16.mxu0 0
    %288 = vmatpush1.bf16.msra.mxu0 0
    %289 = vmatprep.subr.bf16.mxu0 0
    %290 = vmatpush1.bf16.msra.mxu0 0
    %291 = vmatprep.subr.bf16.mxu0 0
    %292 = vmatpush1.bf16.msra.mxu0 0
    %293 = vmatprep.subr.bf16.mxu0 0
    %294 = vmatpush1.bf16.msra.mxu0 0
    %295 = vmatprep.subr.bf16.mxu0 0
    %296 = vmatpush1.bf16.msra.mxu0 0
    %297 = vmatprep.subr.bf16.mxu0 0
    %298 = vmatpush1.bf16.msra.mxu0 0
    %299 = vmatprep.mubr.bf16.mxu0 0
    %300 = vmatmul.mubr.bf16.gmra.mrb[0].mxu0 %v265
    %v301 = vpop.f32.mrb[0].mxu0
    %v302 = vadd.f32 0.0, %v301
    %v303 = vpop.f32.mrb[0].mxu0
    %v304 = vpop.f32.mrb[0].mxu0
    %v305 = vpop.f32.mrb[0].mxu0
    %306 = vdwg.mxu0
    %v307 = vadd.f32 %v160, %v302
    %v308 = vmul.f32 %v307, 0.5
    %v309 = vsel %vm189, %v307, %v308
    %v310 = vtanh.pop %v309
    %v311 = vmul.f32 %v310, 0.5
    %v312 = vadd.f32 %v311, 0.5
    %v313 = vsel %vm189, %v310, %v312
    %v314 = vmul.f32 %v313, %v253
    %316 = vrot.lane.b32.xlu0 %v313, 64
    %v317 = vpop.permute.xlu0 %316
    %v319 = vmul.f32 %v313, %v317
    %321 = vrot.lane.b32.xlu0 %v319, 32
    %v322 = vpop.permute.xlu0 %321
    %v324 = vadd.f32 %v314, %v322
    %v325 = vtanh.pop %v324
    %327 = vrot.lane.b32.xlu0 %v325, 64
    %v328 = vpop.permute.xlu0 %327
    %v330 = vmul.f32 %v313, %v328
    %v331 = vpack.c.bf16 %v330, %v330
    %333 = vrot.lane.b32.xlu0 %v331, 32
    %v334 = vpop.permute.xlu0 %333
    %v336 = vsel %vm192, %v334, 0
    %338 = vmatprep.subr.bf16.mxu0 0
    %339 = vmatpush1.bf16.msra.mxu0 %v190
    %340 = vmatprep.subr.bf16.mxu0 0
    %341 = vmatpush1.bf16.msra.mxu0 %v191
    %342 = vmatprep.subr.bf16.mxu0 0
    %343 = vmatpush1.bf16.msra.mxu0 0
    %344 = vmatprep.subr.bf16.mxu0 0
    %345 = vmatpush1.bf16.msra.mxu0 0
    %346 = vmatprep.subr.bf16.mxu0 0
    %347 = vmatpush1.bf16.msra.mxu0 0
    %348 = vmatprep.subr.bf16.mxu0 0
    %349 = vmatpush1.bf16.msra.mxu0 0
    %350 = vmatprep.subr.bf16.mxu0 0
    %351 = vmatpush1.bf16.msra.mxu0 0
    %352 = vmatprep.subr.bf16.mxu0 0
    %353 = vmatpush1.bf16.msra.mxu0 0
    %354 = vmatprep.subr.bf16.mxu0 0
    %355 = vmatpush1.bf16.msra.mxu0 0
    %356 = vmatprep.subr.bf16.mxu0 0
    %357 = vmatpush1.bf16.msra.mxu0 0
    %358 = vmatprep.subr.bf16.mxu0 0
    %359 = vmatpush1.bf16.msra.mxu0 0
    %360 = vmatprep.subr.bf16.mxu0 0
    %361 = vmatpush1.bf16.msra.mxu0 0
    %362 = vmatprep.subr.bf16.mxu0 0
    %363 = vmatpush1.bf16.msra.mxu0 0
    %364 = vmatprep.subr.bf16.mxu0 0
    %365 = vmatpush1.bf16.msra.mxu0 0
    %366 = vmatprep.subr.bf16.mxu0 0
    %367 = vmatpush1.bf16.msra.mxu0 0
    %368 = vmatprep.subr.bf16.mxu0 0
    %369 = vmatpush1.bf16.msra.mxu0 0
    %370 = vmatprep.mubr.bf16.mxu0 0
    %371 = vmatmul.mubr.bf16.gmra.mrb[0].mxu0 %v336
    %v372 = vpop.f32.mrb[0].mxu0
    %v373 = vadd.f32 0.0, %v372
    %v374 = vpop.f32.mrb[0].mxu0
    %v375 = vpop.f32.mrb[0].mxu0
    %v376 = vpop.f32.mrb[0].mxu0
    %377 = vdwg.mxu0
    %v378 = vadd.f32 %v165, %v373
    %v379 = vmul.f32 %v378, 0.5
    %v380 = vsel %vm189, %v378, %v379
    %v381 = vtanh.pop %v380
    %v382 = vmul.f32 %v381, 0.5
    %v383 = vadd.f32 %v382, 0.5
    %v384 = vsel %vm189, %v381, %v383
    %v385 = vmul.f32 %v384, %v324
    %387 = vrot.lane.b32.xlu0 %v384, 64
    %v388 = vpop.permute.xlu0 %387
    %v390 = vmul.f32 %v384, %v388
    %392 = vrot.lane.b32.xlu0 %v390, 32
    %v393 = vpop.permute.xlu0 %392
    %v395 = vadd.f32 %v385, %v393
    %v396 = vtanh.pop %v395
    %398 = vrot.lane.b32.xlu0 %v396, 64
    %v399 = vpop.permute.xlu0 %398
    %v401 = vmul.f32 %v384, %v399
    %v402 = vpack.c.bf16 %v401, %v401
    %404 = vrot.lane.b32.xlu0 %v402, 32
    %v405 = vpop.permute.xlu0 %404
    %v407 = vsel %vm192, %v405, 0
    %409 = vmatprep.subr.bf16.mxu0 0
    %410 = vmatpush1.bf16.msra.mxu0 %v190
    %411 = vmatprep.subr.bf16.mxu0 0
    %412 = vmatpush1.bf16.msra.mxu0 %v191
    %413 = vmatprep.subr.bf16.mxu0 0
    %414 = vmatpush1.bf16.msra.mxu0 0
    %415 = vmatprep.subr.bf16.mxu0 0
    %416 = vmatpush1.bf16.msra.mxu0 0
    %417 = vmatprep.subr.bf16.mxu0 0
    %418 = vmatpush1.bf16.msra.mxu0 0
    %419 = vmatprep.subr.bf16.mxu0 0
    %420 = vmatpush1.bf16.msra.mxu0 0
    %421 = vmatprep.subr.bf16.mxu0 0
    %422 = vmatpush1.bf16.msra.mxu0 0
    %423 = vmatprep.subr.bf16.mxu0 0
    %424 = vmatpush1.bf16.msra.mxu0 0
    %425 = vmatprep.subr.bf16.mxu0 0
    %426 = vmatpush1.bf16.msra.mxu0 0
    %427 = vmatprep.subr.bf16.mxu0 0
    %428 = vmatpush1.bf16.msra.mxu0 0
    %429 = vmatprep.subr.bf16.mxu0 0
    %430 = vmatpush1.bf16.msra.mxu0 0
    %431 = vmatprep.subr.bf16.mxu0 0
    %432 = vmatpush1.bf16.msra.mxu0 0
    %433 = vmatprep.subr.bf16.mxu0 0
    %434 = vmatpush1.bf16.msra.mxu0 0
    %435 = vmatprep.subr.bf16.mxu0 0
    %436 = vmatpush1.bf16.msra.mxu0 0
    %437 = vmatprep.subr.bf16.mxu0 0
    %438 = vmatpush1.bf16.msra.mxu0 0
    %439 = vmatprep.subr.bf16.mxu0 0
    %440 = vmatpush1.bf16.msra.mxu0 0
    %441 = vmatprep.mubr.bf16.mxu0 0
    %442 = vmatmul.mubr.bf16.gmra.mrb[0].mxu0 %v407
    %v443 = vpop.f32.mrb[0].mxu0
    %v444 = vadd.f32 0.0, %v443
    %v445 = vpop.f32.mrb[0].mxu0
    %v446 = vpop.f32.mrb[0].mxu0
    %v447 = vpop.f32.mrb[0].mxu0
    %448 = vdwg.mxu0
    %v449 = vadd.f32 %v168, %v444
    %v450 = vmul.f32 %v449, 0.5
    %v451 = vsel %vm189, %v449, %v450
    %v452 = vtanh.pop %v451
    %v453 = vmul.f32 %v452, 0.5
    %v454 = vadd.f32 %v453, 0.5
    %v455 = vsel %vm189, %v452, %v454
    %v456 = vmul.f32 %v455, %v395
    %458 = vrot.lane.b32.xlu0 %v455, 64
    %v459 = vpop.permute.xlu0 %458
    %v461 = vmul.f32 %v455, %v459
    %463 = vrot.lane.b32.xlu0 %v461, 32
    %v464 = vpop.permute.xlu0 %463
    %v466 = vadd.f32 %v456, %v464
    %v467 = vtanh.pop %v466
    %469 = vrot.lane.b32.xlu0 %v467, 64
    %v470 = vpop.permute.xlu0 %469
    %v472 = vmul.f32 %v455, %v470
    %v473 = vpack.c.bf16 %v472, %v472
    %475 = vrot.lane.b32.xlu0 %v473, 32
    %v476 = vpop.permute.xlu0 %475
    %v478 = vsel %vm192, %v476, 0
    %480 = vmatprep.subr.bf16.mxu0 0
    %481 = vmatpush1.bf16.msra.mxu0 %v190
    %482 = vmatprep.subr.bf16.mxu0 0
    %483 = vmatpush1.bf16.msra.mxu0 %v191
    %484 = vmatprep.subr.bf16.mxu0 0
    %485 = vmatpush1.bf16.msra.mxu0 0
    %486 = vmatprep.subr.bf16.mxu0 0
    %487 = vmatpush1.bf16.msra.mxu0 0
    %488 = vmatprep.subr.bf16.mxu0 0
    %489 = vmatpush1.bf16.msra.mxu0 0
    %490 = vmatprep.subr.bf16.mxu0 0
    %491 = vmatpush1.bf16.msra.mxu0 0
    %492 = vmatprep.subr.bf16.mxu0 0
    %493 = vmatpush1.bf16.msra.mxu0 0
    %494 = vmatprep.subr.bf16.mxu0 0
    %495 = vmatpush1.bf16.msra.mxu0 0
    %496 = vmatprep.subr.bf16.mxu0 0
    %497 = vmatpush1.bf16.msra.mxu0 0
    %498 = vmatprep.subr.bf16.mxu0 0
    %499 = vmatpush1.bf16.msra.mxu0 0
    %500 = vmatprep.subr.bf16.mxu0 0
    %501 = vmatpush1.bf16.msra.mxu0 0
    %502 = vmatprep.subr.bf16.mxu0 0
    %503 = vmatpush1.bf16.msra.mxu0 0
    %504 = vmatprep.subr.bf16.mxu0 0
    %505 = vmatpush1.bf16.msra.mxu0 0
    %506 = vmatprep.subr.bf16.mxu0 0
    %507 = vmatpush1.bf16.msra.mxu0 0
    %508 = vmatprep.subr.bf16.mxu0 0
    %509 = vmatpush1.bf16.msra.mxu0 0
    %510 = vmatprep.subr.bf16.mxu0 0
    %511 = vmatpush1.bf16.msra.mxu0 0
    %512 = vmatprep.mubr.bf16.mxu0 0
    %513 = vmatmul.mubr.bf16.gmra.mrb[0].mxu0 %v478
    %v514 = vpop.f32.mrb[0].mxu0
    %v515 = vadd.f32 0.0, %v514
    %v516 = vpop.f32.mrb[0].mxu0
    %v517 = vpop.f32.mrb[0].mxu0
    %v518 = vpop.f32.mrb[0].mxu0
    %519 = vdwg.mxu0
    %v520 = vadd.f32 %v173, %v515
    %v521 = vmul.f32 %v520, 0.5
    %v522 = vsel %vm189, %v520, %v521
    %v523 = vtanh.pop %v522
    %v524 = vmul.f32 %v523, 0.5
    %v525 = vadd.f32 %v524, 0.5
    %v526 = vsel %vm189, %v523, %v525
    %v527 = vmul.f32 %v526, %v466
    %529 = vrot.lane.b32.xlu0 %v526, 64
    %v530 = vpop.permute.xlu0 %529
    %v532 = vmul.f32 %v526, %v530
    %534 = vrot.lane.b32.xlu0 %v532, 32
    %v535 = vpop.permute.xlu0 %534
    %v537 = vadd.f32 %v527, %v535
    %v538 = vtanh.pop %v537
    %540 = vrot.lane.b32.xlu0 %v538, 64
    %v541 = vpop.permute.xlu0 %540
    %v543 = vmul.f32 %v526, %v541
    %v544 = vpack.c.bf16 %v543, %v543
    %546 = vrot.lane.b32.xlu0 %v544, 32
    %v547 = vpop.permute.xlu0 %546
    %v549 = vsel %vm192, %v547, 0
    %551 = vmatprep.subr.bf16.mxu0 0
    %552 = vmatpush1.bf16.msra.mxu0 %v190
    %553 = vmatprep.subr.bf16.mxu0 0
    %554 = vmatpush1.bf16.msra.mxu0 %v191
    %555 = vmatprep.subr.bf16.mxu0 0
    %556 = vmatpush1.bf16.msra.mxu0 0
    %557 = vmatprep.subr.bf16.mxu0 0
    %558 = vmatpush1.bf16.msra.mxu0 0
    %559 = vmatprep.subr.bf16.mxu0 0
    %560 = vmatpush1.bf16.msra.mxu0 0
    %561 = vmatprep.subr.bf16.mxu0 0
    %562 = vmatpush1.bf16.msra.mxu0 0
    %563 = vmatprep.subr.bf16.mxu0 0
    %564 = vmatpush1.bf16.msra.mxu0 0
    %565 = vmatprep.subr.bf16.mxu0 0
    %566 = vmatpush1.bf16.msra.mxu0 0
    %567 = vmatprep.subr.bf16.mxu0 0
    %568 = vmatpush1.bf16.msra.mxu0 0
    %569 = vmatprep.subr.bf16.mxu0 0
    %570 = vmatpush1.bf16.msra.mxu0 0
    %571 = vmatprep.subr.bf16.mxu0 0
    %572 = vmatpush1.bf16.msra.mxu0 0
    %573 = vmatprep.subr.bf16.mxu0 0
    %574 = vmatpush1.bf16.msra.mxu0 0
    %575 = vmatprep.subr.bf16.mxu0 0
    %576 = vmatpush1.bf16.msra.mxu0 0
    %577 = vmatprep.subr.bf16.mxu0 0
    %578 = vmatpush1.bf16.msra.mxu0 0
    %579 = vmatprep.subr.bf16.mxu0 0
    %580 = vmatpush1.bf16.msra.mxu0 0
    %581 = vmatprep.subr.bf16.mxu0 0
    %582 = vmatpush1.bf16.msra.mxu0 0
    %583 = vmatprep.mubr.bf16.mxu0 0
    %584 = vmatmul.mubr.bf16.gmra.mrb[0].mxu0 %v549
    %v585 = vpop.f32.mrb[0].mxu0
    %v586 = vadd.f32 0.0, %v585
    %v587 = vpop.f32.mrb[0].mxu0
    %v588 = vpop.f32.mrb[0].mxu0
    %v589 = vpop.f32.mrb[0].mxu0
    %590 = vdwg.mxu0
    %v591 = vadd.f32 %v176, %v586
    %v592 = vmul.f32 %v591, 0.5
    %v593 = vsel %vm189, %v591, %v592
    %v594 = vtanh.pop %v593
    %v595 = vmul.f32 %v594, 0.5
    %v596 = vadd.f32 %v595, 0.5
    %v597 = vsel %vm189, %v594, %v596
    %v598 = vmul.f32 %v597, %v537
    %600 = vrot.lane.b32.xlu0 %v597, 64
    %v601 = vpop.permute.xlu0 %600
    %v603 = vmul.f32 %v597, %v601
    %605 = vrot.lane.b32.xlu0 %v603, 32
    %v606 = vpop.permute.xlu0 %605
    %v608 = vadd.f32 %v598, %v606
    %v609 = vtanh.pop %v608
    %611 = vrot.lane.b32.xlu0 %v609, 64
    %v612 = vpop.permute.xlu0 %611
    %v614 = vmul.f32 %v597, %v612
    %v615 = vpack.c.bf16 %v614, %v614
    %617 = vrot.lane.b32.xlu0 %v615, 32
    %v618 = vpop.permute.xlu0 %617
    %v620 = vsel %vm192, %v618, 0
    %622 = vmatprep.subr.bf16.mxu0 0
    %623 = vmatpush1.bf16.msra.mxu0 %v190
    %624 = vmatprep.subr.bf16.mxu0 0
    %625 = vmatpush1.bf16.msra.mxu0 %v191
    %626 = vmatprep.subr.bf16.mxu0 0
    %627 = vmatpush1.bf16.msra.mxu0 0
    %628 = vmatprep.subr.bf16.mxu0 0
    %629 = vmatpush1.bf16.msra.mxu0 0
    %630 = vmatprep.subr.bf16.mxu0 0
    %631 = vmatpush1.bf16.msra.mxu0 0
    %632 = vmatprep.subr.bf16.mxu0 0
    %633 = vmatpush1.bf16.msra.mxu0 0
    %634 = vmatprep.subr.bf16.mxu0 0
    %635 = vmatpush1.bf16.msra.mxu0 0
    %636 = vmatprep.subr.bf16.mxu0 0
    %637 = vmatpush1.bf16.msra.mxu0 0
    %638 = vmatprep.subr.bf16.mxu0 0
    %639 = vmatpush1.bf16.msra.mxu0 0
    %640 = vmatprep.subr.bf16.mxu0 0
    %641 = vmatpush1.bf16.msra.mxu0 0
    %642 = vmatprep.subr.bf16.mxu0 0
    %643 = vmatpush1.bf16.msra.mxu0 0
    %644 = vmatprep.subr.bf16.mxu0 0
    %645 = vmatpush1.bf16.msra.mxu0 0
    %646 = vmatprep.subr.bf16.mxu0 0
    %647 = vmatpush1.bf16.msra.mxu0 0
    %648 = vmatprep.subr.bf16.mxu0 0
    %649 = vmatpush1.bf16.msra.mxu0 0
    %650 = vmatprep.subr.bf16.mxu0 0
    %651 = vmatpush1.bf16.msra.mxu0 0
    %652 = vmatprep.subr.bf16.mxu0 0
    %653 = vmatpush1.bf16.msra.mxu0 0
    %654 = vmatprep.mubr.bf16.mxu0 0
    %655 = vmatmul.mubr.bf16.gmra.mrb[0].mxu0 %v620
    %v656 = vpop.f32.mrb[0].mxu0
    %v657 = vadd.f32 0.0, %v656
    %v658 = vpop.f32.mrb[0].mxu0
    %v659 = vpop.f32.mrb[0].mxu0
    %v660 = vpop.f32.mrb[0].mxu0
    %661 = vdwg.mxu0
    %v662 = vadd.f32 %v181, %v657
    %v663 = vmul.f32 %v662, 0.5
    %v664 = vsel %vm189, %v662, %v663
    %v665 = vtanh.pop %v664
    %v666 = vmul.f32 %v665, 0.5
    %v667 = vadd.f32 %v666, 0.5
    %v668 = vsel %vm189, %v665, %v667
    %v669 = vmul.f32 %v668, %v608
    %671 = vrot.lane.b32.xlu0 %v668, 64
    %v672 = vpop.permute.xlu0 %671
    %v674 = vmul.f32 %v668, %v672
    %676 = vrot.lane.b32.xlu0 %v674, 32
    %v677 = vpop.permute.xlu0 %676
    %v679 = vadd.f32 %v669, %v677
    %v680 = vtanh.pop %v679
    %682 = vrot.lane.b32.xlu0 %v680, 64
    %v683 = vpop.permute.xlu0 %682
    %v685 = vmul.f32 %v668, %v683
    %v686 = vpack.c.bf16 %v685, %v685
    %688 = vrot.lane.b32.xlu0 %v686, 32
    %v689 = vpop.permute.xlu0 %688
    %v691 = vsel %vm192, %v689, 0
    %693 = vmatprep.subr.bf16.mxu0 0
    %694 = vmatpush1.bf16.msra.mxu0 %v190
    %695 = vmatprep.subr.bf16.mxu0 0
    %696 = vmatpush1.bf16.msra.mxu0 %v191
    %697 = vmatprep.subr.bf16.mxu0 0
    %698 = vmatpush1.bf16.msra.mxu0 0
    %699 = vmatprep.subr.bf16.mxu0 0
    %700 = vmatpush1.bf16.msra.mxu0 0
    %701 = vmatprep.subr.bf16.mxu0 0
    %702 = vmatpush1.bf16.msra.mxu0 0
    %703 = vmatprep.subr.bf16.mxu0 0
    %704 = vmatpush1.bf16.msra.mxu0 0
    %705 = vmatprep.subr.bf16.mxu0 0
    %706 = vmatpush1.bf16.msra.mxu0 0
    %707 = vmatprep.subr.bf16.mxu0 0
    %708 = vmatpush1.bf16.msra.mxu0 0
    %709 = vmatprep.subr.bf16.mxu0 0
    %710 = vmatpush1.bf16.msra.mxu0 0
    %711 = vmatprep.subr.bf16.mxu0 0
    %712 = vmatpush1.bf16.msra.mxu0 0
    %713 = vmatprep.subr.bf16.mxu0 0
    %714 = vmatpush1.bf16.msra.mxu0 0
    %715 = vmatprep.subr.bf16.mxu0 0
    %716 = vmatpush1.bf16.msra.mxu0 0
    %717 = vmatprep.subr.bf16.mxu0 0
    %718 = vmatpush1.bf16.msra.mxu0 0
    %719 = vmatprep.subr.bf16.mxu0 0
    %720 = vmatpush1.bf16.msra.mxu0 0
    %721 = vmatprep.subr.bf16.mxu0 0
    %722 = vmatpush1.bf16.msra.mxu0 0
    %723 = vmatprep.subr.bf16.mxu0 0
    %724 = vmatpush1.bf16.msra.mxu0 0
    %725 = vmatprep.mubr.bf16.mxu0 0
    %726 = vmatmul.mubr.bf16.gmra.mrb[0].mxu0 %v691
    %v727 = vpop.f32.mrb[0].mxu0
    %v728 = vadd.f32 0.0, %v727
    %v729 = vpop.f32.mrb[0].mxu0
    %v730 = vpop.f32.mrb[0].mxu0
    %v731 = vpop.f32.mrb[0].mxu0
    %732 = vdwg.mxu0
    %v733 = vadd.f32 %v184, %v728
    %v734 = vmul.f32 %v733, 0.5
    %v735 = vsel %vm189, %v733, %v734
    %v736 = vtanh.pop %v735
    %v737 = vmul.f32 %v736, 0.5
    %v738 = vadd.f32 %v737, 0.5
    %v739 = vsel %vm189, %v736, %v738
    %v740 = vmul.f32 %v739, %v679
    %742 = vrot.lane.b32.xlu0 %v739, 64
    %v743 = vpop.permute.xlu0 %742
    %v745 = vmul.f32 %v739, %v743
    %747 = vrot.lane.b32.xlu0 %v745, 32
    %v748 = vpop.permute.xlu0 %747
    %v750 = vadd.f32 %v740, %v748
    %v751 = vtanh.pop %v750
    %753 = vrot.lane.b32.xlu0 %v751, 64
    %v754 = vpop.permute.xlu0 %753
    %v756 = vmul.f32 %v739, %v754
    %v757 = vpack.c.bf16 %v756, %v756
    %v758 = vpack.c.bf16 %v39, %v38
    %v759 = vpack.c.bf16 %v41, %v40
    %v760 = vlaneseq
    %v761 = vshrl.u32 %v760, 7
    %v762 = vsub.s32 0, %v761
    %v763 = vrot.slane %v42, %v762
    %765 = vrot.lane.b32.xlu0 %v757, 32
    %v766 = vpop.permute.xlu0 %765
    %v768 = vsel %vm192, %v766, 0
    %770 = vmatprep.subr.bf16.mxu0 0
    %771 = vmatpush1.bf16.msra.mxu0 %v758
    %772 = vmatprep.subr.bf16.mxu0 0
    %773 = vmatpush1.bf16.msra.mxu0 %v759
    %774 = vmatprep.subr.bf16.mxu0 0
    %775 = vmatpush1.bf16.msra.mxu0 0
    %776 = vmatprep.subr.bf16.mxu0 0
    %777 = vmatpush1.bf16.msra.mxu0 0
    %778 = vmatprep.subr.bf16.mxu0 0
    %779 = vmatpush1.bf16.msra.mxu0 0
    %780 = vmatprep.subr.bf16.mxu0 0
    %781 = vmatpush1.bf16.msra.mxu0 0
    %782 = vmatprep.subr.bf16.mxu0 0
    %783 = vmatpush1.bf16.msra.mxu0 0
    %784 = vmatprep.subr.bf16.mxu0 0
    %785 = vmatpush1.bf16.msra.mxu0 0
    %786 = vmatprep.subr.bf16.mxu0 0
    %787 = vmatpush1.bf16.msra.mxu0 0
    %788 = vmatprep.subr.bf16.mxu0 0
    %789 = vmatpush1.bf16.msra.mxu0 0
    %790 = vmatprep.subr.bf16.mxu0 0
    %791 = vmatpush1.bf16.msra.mxu0 0
    %792 = vmatprep.subr.bf16.mxu0 0
    %793 = vmatpush1.bf16.msra.mxu0 0
    %794 = vmatprep.subr.bf16.mxu0 0
    %795 = vmatpush1.bf16.msra.mxu0 0
    %796 = vmatprep.subr.bf16.mxu0 0
    %797 = vmatpush1.bf16.msra.mxu0 0
    %798 = vmatprep.subr.bf16.mxu0 0
    %799 = vmatpush1.bf16.msra.mxu0 0
    %800 = vmatprep.subr.bf16.mxu0 0
    %801 = vmatpush1.bf16.msra.mxu0 0
    %802 = vmatprep.mubr.bf16.mxu0 0
    %803 = vmatmul.mubr.bf16.gmra.mrb[0].mxu0 %v768
    %v804 = vpop.f32.mrb[0].mxu0
    %v805 = vadd.f32 %v763, %v804
    %v806 = vpop.f32.mrb[0].mxu0
    %v807 = vpop.f32.mrb[0].mxu0
    %v808 = vpop.f32.mrb[0].mxu0
    %809 = vdwg.mxu0
    %v810 = vmax.f32 %v805, 0.0
    %v811 = vlaneseq
    %v812 = vshrl.u32 %v811, 7
    %v813 = vsub.s32 1, %v812
    %v814 = vrot.slane %v42, %v813
    %v815 = vmul.f32 %v810, %v814
    %816 = vadd.xlane.f32.xlu0 %v815
    %v817 = vpop.xlane.xlu0 %816
    %v818 = vmul.f32 %v817, 0.5
    %v819 = vtanh.pop %v818
    %v820 = vmul.f32 %v819, 0.5
    %v821 = vadd.f32 %v820, 0.5
    %vm822 = vcmask 1024
    %823 = vst.msk [vmem:[%s2] sm:$0x3] %vm822, %v821
    // Predicated region
    $region14: #{tpu_custom_call.1} parent=1 // pred_check
      _
    $region15: #{tpu_custom_call.1} parent=1 // pred_check_branch
      %825 = sbr.rel (0) target = $region17
    $region16: #{tpu_custom_call.1} parent=1 // pred_region
      _
    $region17: #{tpu_custom_call.1} parent=1 // pred_fallthru
      _
    // Predicated region
    $region18: #{tpu_custom_call.1} parent=1 // pred_check
      _
    $region19: #{tpu_custom_call.1} parent=1 // pred_check_branch
      %827 = sbr.rel (0) target = $region21
    $region20: #{tpu_custom_call.1} parent=1 // pred_region
      _
    $region21: #{tpu_custom_call.1} parent=1 // pred_fallthru
      _
    %828 = vsyncpa [#allocation3], 1

</llo_original>
